<compile_context>
chip_gen: v7x
topology: tpu7x:2x2x1
jax: 0.10.0
libtpu: 0.0.40
codegen_flags: <defaults>
</compile_context>

<pallas_src>
import functools

import jax
import jax.numpy as jnp
from jax.experimental import pallas as pl
from jax.experimental.pallas import tpu as pltpu


def _round_up(n, m):
    return ((n + m - 1) // m) * m


# ---------------------------------------------------------------------------
# Kernels
# ---------------------------------------------------------------------------
def _ae_kernel_2mm(x_ref, we_ref, be_ref, wd_ref, bd_ref, o_ref):
    # x_ref : (TB, num_nodes)            caller dtype (cast in-kernel)
    # we_ref: (num_nodes, L_pad)         encoder weight, pre-transposed, zero-padded
    # be_ref: (1, L_pad)                 f32, zero in padded columns
    # wd_ref: (L_pad, num_nodes)         decoder weight, pre-transposed, zero-padded
    # bd_ref: (1, num_nodes)             f32
    # o_ref : (TB, num_nodes)            out_dtype
    x = x_ref[...].astype(we_ref.dtype)           # in-kernel cast (free VPU slot)
    # Encoder: Linear(num_nodes -> latent)  -- MXU, f32 accumulation
    z = jnp.dot(x, we_ref[...], preferred_element_type=jnp.float32) + be_ref[...]
    # Decoder: Linear(latent -> num_nodes)  -- MXU, f32 accumulation
    y = (jnp.dot(z.astype(wd_ref.dtype), wd_ref[...],
                 preferred_element_type=jnp.float32) + bd_ref[...])
    # nn.Sigmoid()  (logistic on the EUP slot); cast only on the final store
    o_ref[...] = jax.nn.sigmoid(y).astype(o_ref.dtype)


def _ae_kernel_folded(x_ref, w_ref, b_ref, o_ref):
    # x_ref: (TB, num_nodes), w_ref: (num_nodes, num_nodes), b_ref: (1, num_nodes)
    x = x_ref[...].astype(w_ref.dtype)
    y = jnp.dot(x, w_ref[...], preferred_element_type=jnp.float32) + b_ref[...]
    o_ref[...] = jax.nn.sigmoid(y).astype(o_ref.dtype)


# ---------------------------------------------------------------------------
# One-time parameter preparation (run at parameter-load time, NOT per call)
# ---------------------------------------------------------------------------
def prepare_classic_ae_params(w_enc, b_enc, w_dec, b_dec,
                              compute_dtype=jnp.float32, fold=False):
    """PyTorch-layout params (out, in)/(out,) -> kernel-ready, MXU-friendly layout."""
    latent, num_nodes = w_enc.shape

    if fold:
        # Size guard: the folded (N, N) weight must stay comfortably VMEM-resident
        # (double-buffer budget) and cheaper than two skinny matmuls; otherwise
        # fall back to the faithful two-matmul path.
        folded_bytes = num_nodes * num_nodes * jnp.dtype(compute_dtype).itemsize
        if folded_bytes > 8 * 1024 * 1024:
            fold = False

    if fold:
        # TODO(synk): only valid because Encoder/Decoder are modeled as bare nn.Linear
        #             layers with no hidden activation.
        w_comb = w_enc.T.astype(jnp.float32) @ w_dec.T.astype(jnp.float32)     # (N, N)
        b_comb = (b_enc.astype(jnp.float32) @ w_dec.T.astype(jnp.float32)
                  + b_dec.astype(jnp.float32))                                 # (N,)
        return {
            "mode": "folded",
            "arrays": (w_comb.astype(compute_dtype),
                       b_comb.reshape(1, num_nodes).astype(jnp.float32)),
        }

    # Pad latent only to the compute-dtype sublane multiple (not 128): keeps the
    # wd_t sublane tiling clean without inflating weight VMEM/DMA bytes.
    sub = 16 if jnp.dtype(compute_dtype) == jnp.dtype(jnp.bfloat16) else 8
    l_pad = _round_up(latent, sub)

    we_t = jnp.zeros((num_nodes, l_pad), compute_dtype)
    we_t = we_t.at[:, :latent].set(w_enc.T.astype(compute_dtype))
    wd_t = jnp.zeros((l_pad, num_nodes), compute_dtype)
    wd_t = wd_t.at[:latent, :].set(w_dec.T.astype(compute_dtype))
    be = jnp.zeros((1, l_pad), jnp.float32).at[:, :latent].set(b_enc.astype(jnp.float32))
    bd = b_dec.reshape(1, num_nodes).astype(jnp.float32)
    return {"mode": "two_matmul", "arrays": (we_t, be, wd_t, bd)}


# ---------------------------------------------------------------------------
# Jitted per-mode wrappers (arrays only cross the jit boundary)
# ---------------------------------------------------------------------------
def _pick_tb(batch, tb):
    # >=2 grid steps for medium/large batches (feeds both v7x TensorCores),
    # 16-row granularity (safe for both f32 and bf16 sublane packing).
    return min(tb, max(16, _round_up(pl.cdiv(batch, 2), 16)))


def _common_specs(TB, num_nodes, const_arrays):
    row_spec = pl.BlockSpec((TB, num_nodes), lambda i: (i, 0))
    # Constant index_map -> fetched once, VMEM-resident across all batch tiles.
    const_specs = [pl.BlockSpec(a.shape, lambda i: (0, 0)) for a in const_arrays]
    return row_spec, const_specs


@functools.partial(jax.jit, static_argnames=("num_nodes", "tb", "out_dtype"))
def _forward_2mm(x, we_t, be, wd_t, bd, *, num_nodes, tb, out_dtype):
    # View(num_nodes): reshape to (-1, num_nodes)   (glue; dtype untouched)
    x2d = x.reshape(-1, num_nodes)
    B = x2d.shape[0]
    TB = _pick_tb(B, tb)
    grid = (pl.cdiv(B, TB),)                      # ragged last block masked by Pallas
    row_spec, const_specs = _common_specs(TB, num_nodes, (we_t, be, wd_t, bd))

    return pl.pallas_call(
        _ae_kernel_2mm,
        out_shape=jax.ShapeDtypeStruct((B, num_nodes), out_dtype),
        grid=grid,
        in_specs=[row_spec] + const_specs,
        out_specs=row_spec,
        compiler_params=pltpu.CompilerParams(dimension_semantics=("parallel",)),
    )(x2d, we_t, be, wd_t, bd)


@functools.partial(jax.jit, static_argnames=("num_nodes", "tb", "out_dtype"))
def _forward_folded(x, w_comb, b_comb, *, num_nodes, tb, out_dtype):
    x2d = x.reshape(-1, num_nodes)
    B = x2d.shape[0]
    TB = _pick_tb(B, tb)
    grid = (pl.cdiv(B, TB),)
    row_spec, const_specs = _common_specs(TB, num_nodes, (w_comb, b_comb))

    return pl.pallas_call(
        _ae_kernel_folded,
        out_shape=jax.ShapeDtypeStruct((B, num_nodes), out_dtype),
        grid=grid,
        in_specs=[row_spec] + const_specs,
        out_specs=row_spec,
        compiler_params=pltpu.CompilerParams(dimension_semantics=("parallel",)),
    )(x2d, w_comb, b_comb)


def classic_ae_sequential_forward(x, params, num_nodes, tb=1024, out_dtype=jnp.float32):
    """x: (B*num_nodes, num_features) -> (B, num_nodes) after Encoder/Decoder + sigmoid."""
    if params["mode"] == "folded":
        return _forward_folded(x, *params["arrays"],
                               num_nodes=num_nodes, tb=tb, out_dtype=out_dtype)
    return _forward_2mm(x, *params["arrays"],
                        num_nodes=num_nodes, tb=tb, out_dtype=out_dtype)


# ---------------------------------------------------------------------------
# Pure-JAX reference
# ---------------------------------------------------------------------------
def _reference_forward(x, w_enc, b_enc, w_dec, b_dec, num_nodes):
    x2d = x.reshape(-1, num_nodes).astype(jnp.float32)
    z = x2d @ w_enc.T + b_enc
    y = z @ w_dec.T + b_dec
    return jax.nn.sigmoid(y)


if __name__ == "__main__":
    # Module hyper-parameters (small, consistent with the forward pass)
    num_nodes = 128
    num_features = 1
    latent_space_dim = 32
    batch_size = 2

    key = jax.random.PRNGKey(0)
    kx, k1, k2, k3, k4, kx2 = jax.random.split(key, 6)

    # Input: node-feature vector (batch_size * num_nodes, num_features);
    # View(num_nodes) flattens it to (batch_size, num_nodes).
    x = jax.random.normal(kx, (batch_size * num_nodes, num_features), dtype=jnp.float32)

    # Deterministic synthetic parameters (PyTorch nn.Linear layout: (out, in) / (out,))
    w_enc = 0.05 * jax.random.normal(k1, (latent_space_dim, num_nodes), dtype=jnp.float32)
    b_enc = 0.05 * jax.random.normal(k2, (latent_space_dim,), dtype=jnp.float32)
    w_dec = 0.05 * jax.random.normal(k3, (num_nodes, latent_space_dim), dtype=jnp.float32)
    b_dec = 0.05 * jax.random.normal(k4, (num_nodes,), dtype=jnp.float32)

    ref = _reference_forward(x, w_enc, b_enc, w_dec, b_dec, num_nodes)

    # 1) f32 two-matmul path (faithful Encoder->Decoder structure): exact check.
    params_f32 = prepare_classic_ae_params(w_enc, b_enc, w_dec, b_dec,
                                           compute_dtype=jnp.float32, fold=False)
    out_f32 = jax.block_until_ready(
        classic_ae_sequential_forward(x, params_f32, num_nodes))
    assert out_f32.shape == (batch_size, num_nodes)
    assert jnp.allclose(out_f32, ref, atol=1e-5, rtol=1e-5)

    # 2) f32 folded path (single N x N matmul; valid under the no-activation modeling).
    params_fold = prepare_classic_ae_params(w_enc, b_enc, w_dec, b_dec,
                                            compute_dtype=jnp.float32, fold=True)
    out_fold = jax.block_until_ready(
        classic_ae_sequential_forward(x, params_fold, num_nodes))
    assert jnp.allclose(out_fold, ref, atol=1e-4, rtol=1e-4)

    # 3) bf16 MXU-input path (f32 accumulation, f32 sigmoid, f32 output).
    params_bf16 = prepare_classic_ae_params(w_enc, b_enc, w_dec, b_dec,
                                            compute_dtype=jnp.bfloat16, fold=False)
    out_bf16 = jax.block_until_ready(
        classic_ae_sequential_forward(x, params_bf16, num_nodes))
    assert jnp.allclose(out_bf16, ref, atol=2e-2, rtol=2e-2)

    # 4) bf16 output dtype (f32 accumulate + sigmoid, cast on the final store).
    out_bf16o = jax.block_until_ready(
        classic_ae_sequential_forward(x, params_f32, num_nodes, out_dtype=jnp.bfloat16))
    assert out_bf16o.dtype == jnp.bfloat16
    assert jnp.allclose(out_bf16o.astype(jnp.float32), ref, atol=1e-2, rtol=1e-2)

    # 5) Ragged batch (B % TB != 0, no wrapper pad/slice; Pallas masks the last block).
    B2 = 100
    x_big = jax.random.normal(kx2, (B2 * num_nodes, num_features), dtype=jnp.float32)
    ref_big = _reference_forward(x_big, w_enc, b_enc, w_dec, b_dec, num_nodes)
    out_big = jax.block_until_ready(
        classic_ae_sequential_forward(x_big, params_f32, num_nodes))
    assert out_big.shape == (B2, num_nodes)
    assert jnp.allclose(out_big, ref_big, atol=1e-5, rtol=1e-5)

    print("KERNEL_OK")
</pallas_src>

<mosaic_0001>
module attributes {stable_mosaic.version = 11 : i64} {
  func.func @_ae_kernel_2mm(%arg0: i32, %arg1: memref<16x128xf32, #tpu.memory_space<vmem>>, %arg2: memref<128x32xf32, #tpu.memory_space<vmem>>, %arg3: memref<1x32xf32, #tpu.memory_space<vmem>>, %arg4: memref<32x128xf32, #tpu.memory_space<vmem>>, %arg5: memref<1x128xf32, #tpu.memory_space<vmem>>, %arg6: memref<16x128xf32, #tpu.memory_space<vmem>>) attributes {dimension_semantics = [#tpu.dimension_semantics<parallel>], iteration_bounds = array<i64: 1>, scalar_prefetch = 0 : i64, scratch_operands = 0 : i64, tpu.core_type = #tpu.core_type<tc>, window_params = [{transform_indices = @transform_0, window_bounds = array<i64: 16, 128>}, {pipeline_mode = #tpu.pipeline_mode<synchronous>, transform_indices = @transform_1, window_bounds = array<i64: 128, 32>}, {pipeline_mode = #tpu.pipeline_mode<synchronous>, transform_indices = @transform_2, window_bounds = array<i64: 1, 32>}, {pipeline_mode = #tpu.pipeline_mode<synchronous>, transform_indices = @transform_3, window_bounds = array<i64: 32, 128>}, {pipeline_mode = #tpu.pipeline_mode<synchronous>, transform_indices = @transform_4, window_bounds = array<i64: 1, 128>}, {transform_indices = @transform_5, window_bounds = array<i64: 16, 128>}]} {
    %c0 = arith.constant 0 : index
    %c0_0 = arith.constant 0 : index
    %0 = vector.load %arg1[%c0, %c0_0] : memref<16x128xf32, #tpu.memory_space<vmem>>, vector<16x128xf32>
    %c0_1 = arith.constant 0 : index
    %c0_2 = arith.constant 0 : index
    %1 = vector.load %arg2[%c0_1, %c0_2] : memref<128x32xf32, #tpu.memory_space<vmem>>, vector<128x32xf32>
    %cst = arith.constant dense<0.000000e+00> : vector<16x32xf32>
    %2 = tpu.matmul %0, %1, %cst {dimension_numbers = #tpu.dot_dimension_numbers<[1], [0], [0], [1], [0, 0, 1, 1], [], []>} : vector<16x128xf32>, vector<128x32xf32>, vector<16x32xf32> -> vector<16x32xf32>
    %c0_3 = arith.constant 0 : index
    %c0_4 = arith.constant 0 : index
    %3 = vector.load %arg3[%c0_3, %c0_4] : memref<1x32xf32, #tpu.memory_space<vmem>>, vector<1x32xf32>
    %4 = vector.broadcast %3 : vector<1x32xf32> to vector<16x32xf32>
    %5 = arith.addf %2, %4 : vector<16x32xf32>
    %c0_5 = arith.constant 0 : index
    %c0_6 = arith.constant 0 : index
    %6 = vector.load %arg4[%c0_5, %c0_6] : memref<32x128xf32, #tpu.memory_space<vmem>>, vector<32x128xf32>
    %cst_7 = arith.constant dense<0.000000e+00> : vector<16x128xf32>
    %7 = tpu.matmul %5, %6, %cst_7 {dimension_numbers = #tpu.dot_dimension_numbers<[1], [0], [0], [1], [0, 0, 1, 1], [], []>} : vector<16x32xf32>, vector<32x128xf32>, vector<16x128xf32> -> vector<16x128xf32>
    %c0_8 = arith.constant 0 : index
    %c0_9 = arith.constant 0 : index
    %8 = vector.load %arg5[%c0_8, %c0_9] : memref<1x128xf32, #tpu.memory_space<vmem>>, vector<1x128xf32>
    %9 = vector.broadcast %8 : vector<1x128xf32> to vector<16x128xf32>
    %10 = arith.addf %7, %9 : vector<16x128xf32>
    %11 = arith.negf %10 : vector<16x128xf32>
    %12 = math.exp %11 : vector<16x128xf32>
    %cst_10 = arith.constant 1.000000e+00 : f32
    %13 = vector.broadcast %cst_10 : f32 to vector<16x128xf32>
    %14 = arith.addf %13, %12 : vector<16x128xf32>
    %15 = arith.divf %13, %14 : vector<16x128xf32>
    %c0_11 = arith.constant 0 : index
    %c0_12 = arith.constant 0 : index
    %16 = vector.load %arg6[%c0_11, %c0_12] : memref<16x128xf32, #tpu.memory_space<vmem>>, vector<16x128xf32>
    tpu.vector_store %arg6[%c0_11, %c0_12], %15 {strides = array<i32>} : memref<16x128xf32, #tpu.memory_space<vmem>>, vector<16x128xf32>,
    return
  }
  func.func @transform_0(%arg0: i32) -> (i32, i32) {
    %c0_i32 = arith.constant 0 : i32
    %c0_i32_0 = arith.constant 0 : i32
    return %arg0, %c0_i32 : i32, i32
  }
  func.func @transform_1(%arg0: i32) -> (i32, i32) {
    %c0_i32 = arith.constant 0 : i32
    %c0_i32_0 = arith.constant 0 : i32
    %c0_i32_1 = arith.constant 0 : i32
    return %c0_i32, %c0_i32_0 : i32, i32
  }
  func.func @transform_2(%arg0: i32) -> (i32, i32) {
    %c0_i32 = arith.constant 0 : i32
    %c0_i32_0 = arith.constant 0 : i32
    %c0_i32_1 = arith.constant 0 : i32
    return %c0_i32, %c0_i32_0 : i32, i32
  }
  func.func @transform_3(%arg0: i32) -> (i32, i32) {
    %c0_i32 = arith.constant 0 : i32
    %c0_i32_0 = arith.constant 0 : i32
    %c0_i32_1 = arith.constant 0 : i32
    return %c0_i32, %c0_i32_0 : i32, i32
  }
  func.func @transform_4(%arg0: i32) -> (i32, i32) {
    %c0_i32 = arith.constant 0 : i32
    %c0_i32_0 = arith.constant 0 : i32
    %c0_i32_1 = arith.constant 0 : i32
    return %c0_i32, %c0_i32_0 : i32, i32
  }
  func.func @transform_5(%arg0: i32) -> (i32, i32) {
    %c0_i32 = arith.constant 0 : i32
    %c0_i32_0 = arith.constant 0 : i32
    return %arg0, %c0_i32 : i32, i32
  }
}

</mosaic_0001>

<llo_original>
// kernel: _forward_2mm.1
$region0: #{_forward_2mm.1}
  #allocation0 [shape = 'u32[]', space=smem, size = 0x4, offset = 0x4, fixed_abs, tag = 'smem constant byte address 0x4 - core index']
  #allocation1 [shape = 'u32[144,128]{1,0:T(1,128)}', space=vmem, size = 0x12000, scoped, tag = 'internal scratch']
  %s0 = inlined_call_operand.vmem [shape: f32[2,128], index: 0, kind: input, shape index: {}]
  %s1 = inlined_call_operand.vmem [shape: f32[128,32], index: 1, kind: input, shape index: {}]
  %s2 = inlined_call_operand.vmem [shape: f32[1,32], index: 2, kind: input, shape index: {}]
  %s3 = inlined_call_operand.vmem [shape: f32[32,128], index: 3, kind: input, shape index: {}]
  %s4 = inlined_call_operand.vmem [shape: f32[1,128], index: 4, kind: input, shape index: {}]
  %s5 = inlined_call_operand.hbm [shape: f32[2,128], index: 5, kind: output, shape index: {}]
  %s6 = sld [smem:[#allocation0]]
  $region30: #{_forward_2mm.1} parent=0
    _
  %s8 = ssub.s32 1, %s6
  %s9 = scalar_select 0, %s8, %s6
  $region1: #{_forward_2mm.1} parent=0
    #allocation2 [shape = 'u8[8192]{0}', space=vmem, size = 0x2000, scoped, tag = 'output window, operand 0, single buffered']
    #allocation3 [shape = 's32[1]{0}', space=sflag, size = 0x4, scoped, tag = 'scoped memory for _forward_2mm.1']
    %10 = vsyncpa [#allocation3], 0
    // Predicated region
    $region2: #{_forward_2mm.1} parent=1 // pred_check
      _
    $region3: #{_forward_2mm.1} parent=1 // pred_check_branch
      %12 = sbr.rel (0) target = $region5
    $region4: #{_forward_2mm.1} parent=1 // pred_region
      _
    $region5: #{_forward_2mm.1} parent=1 // pred_fallthru
      _
    // Predicated region
    $region6: #{_forward_2mm.1} parent=1 // pred_check
      _
    $region7: #{_forward_2mm.1} parent=1 // pred_check_branch
      %14 = sbr.rel (0) target = $region9
    $region8: #{_forward_2mm.1} parent=1 // pred_region
      _
    $region9: #{_forward_2mm.1} parent=1 // pred_fallthru
      _
    // Predicated region
    $region10: #{_forward_2mm.1} parent=1 // pred_check
      _
    $region11: #{_forward_2mm.1} parent=1 // pred_check_branch
      %16 = sbr.rel (0) target = $region13
    $region12: #{_forward_2mm.1} parent=1 // pred_region
      _
    $region13: #{_forward_2mm.1} parent=1 // pred_fallthru
      _
    // Predicated region
    $region14: #{_forward_2mm.1} parent=1 // pred_check
      _
    $region15: #{_forward_2mm.1} parent=1 // pred_check_branch
      %18 = sbr.rel (0) target = $region17
    $region16: #{_forward_2mm.1} parent=1 // pred_region
      _
    $region17: #{_forward_2mm.1} parent=1 // pred_fallthru
      _
    // Predicated region
    $region18: #{_forward_2mm.1} parent=1 // pred_check
      _
    $region19: #{_forward_2mm.1} parent=1 // pred_check_branch
      %20 = sbr.rel (0) target = $region21
    $region20: #{_forward_2mm.1} parent=1 // pred_region
      _
    $region21: #{_forward_2mm.1} parent=1 // pred_fallthru
      _
    %v21 = vld [vmem:[%s0] sm:$0xff]
    %v22 = vld [vmem:[%s0 + $0x8] sm:$0xff]
    %v23 = vld [vmem:[%s1] sm:$0xff]
    %v24 = vld [vmem:[%s1 + $0x8] sm:$0xff]
    %v25 = vld [vmem:[%s1 + $0x10] sm:$0xff]
    %v26 = vld [vmem:[%s1 + $0x18] sm:$0xff]
    %v27 = vld [vmem:[%s1 + $0x20] sm:$0xff]
    %v28 = vld [vmem:[%s1 + $0x28] sm:$0xff]
    %v29 = vld [vmem:[%s1 + $0x30] sm:$0xff]
    %v30 = vld [vmem:[%s1 + $0x38] sm:$0xff]
    %v31 = vld [vmem:[%s1 + $0x40] sm:$0xff]
    %v32 = vld [vmem:[%s1 + $0x48] sm:$0xff]
    %v33 = vld [vmem:[%s1 + $0x50] sm:$0xff]
    %v34 = vld [vmem:[%s1 + $0x58] sm:$0xff]
    %v35 = vld [vmem:[%s1 + $0x60] sm:$0xff]
    %v36 = vld [vmem:[%s1 + $0x68] sm:$0xff]
    %v37 = vld [vmem:[%s1 + $0x70] sm:$0xff]
    %v38 = vld [vmem:[%s1 + $0x78] sm:$0xff]
    %v39 = vld [vmem:[%s2] sm:$0x1]
    %v41 = vlaneseq
    %v42 = vshrl.u32 %v41, 7
    %v43 = vsub.s32 0, %v42
    %v44 = vrot.slane %v39, %v43
    %46 = vmatprep.subr.mxu0 0.0
    %47 = vmatpush1.msra.mxu0 %v23
    %48 = vmatprep.subr.mxu0 0.0
    %49 = vmatpush1.msra.mxu0 %v24
    %50 = vmatprep.subr.mxu0 0.0
    %51 = vmatpush1.msra.mxu0 %v25
    %52 = vmatprep.subr.mxu0 0.0
    %53 = vmatpush1.msra.mxu0 %v26
    %54 = vmatprep.subr.mxu0 0.0
    %55 = vmatpush1.msra.mxu0 %v27
    %56 = vmatprep.subr.mxu0 0.0
    %57 = vmatpush1.msra.mxu0 %v28
    %58 = vmatprep.subr.mxu0 0.0
    %59 = vmatpush1.msra.mxu0 %v29
    %60 = vmatprep.subr.mxu0 0.0
    %61 = vmatpush1.msra.mxu0 %v30
    %62 = vmatprep.subr.mxu0 0.0
    %63 = vmatpush1.msra.mxu0 %v31
    %64 = vmatprep.subr.mxu0 0.0
    %65 = vmatpush1.msra.mxu0 %v32
    %66 = vmatprep.subr.mxu0 0.0
    %67 = vmatpush1.msra.mxu0 %v33
    %68 = vmatprep.subr.mxu0 0.0
    %69 = vmatpush1.msra.mxu0 %v34
    %70 = vmatprep.subr.mxu0 0.0
    %71 = vmatpush1.msra.mxu0 %v35
    %72 = vmatprep.subr.mxu0 0.0
    %73 = vmatpush1.msra.mxu0 %v36
    %74 = vmatprep.subr.mxu0 0.0
    %75 = vmatpush1.msra.mxu0 %v37
    %76 = vmatprep.subr.mxu0 0.0
    %77 = vmatpush1.msra.mxu0 %v38
    %78 = vmatprep.subr.mxu0 0.0
    %79 = vmatpush1.msra.mxu0 0.0
    %80 = vmatprep.subr.mxu0 0.0
    %81 = vmatpush1.msra.mxu0 0.0
    %82 = vmatprep.subr.mxu0 0.0
    %83 = vmatpush1.msra.mxu0 0.0
    %84 = vmatprep.subr.mxu0 0.0
    %85 = vmatpush1.msra.mxu0 0.0
    %86 = vmatprep.subr.mxu0 0.0
    %87 = vmatpush1.msra.mxu0 0.0
    %88 = vmatprep.subr.mxu0 0.0
    %89 = vmatpush1.msra.mxu0 0.0
    %90 = vmatprep.subr.mxu0 0.0
    %91 = vmatpush1.msra.mxu0 0.0
    %92 = vmatprep.subr.mxu0 0.0
    %93 = vmatpush1.msra.mxu0 0.0
    %94 = vmatprep.subr.mxu0 0.0
    %95 = vmatpush1.msra.mxu0 0.0
    %96 = vmatprep.subr.mxu0 0.0
    %97 = vmatpush1.msra.mxu0 0.0
    %98 = vmatprep.subr.mxu0 0.0
    %99 = vmatpush1.msra.mxu0 0.0
    %100 = vmatprep.subr.mxu0 0.0
    %101 = vmatpush1.msra.mxu0 0.0
    %102 = vmatprep.subr.mxu0 0.0
    %103 = vmatpush1.msra.mxu0 0.0
    %104 = vmatprep.subr.mxu0 0.0
    %105 = vmatpush1.msra.mxu0 0.0
    %106 = vmatprep.subr.mxu0 0.0
    %107 = vmatpush1.msra.mxu0 0.0
    %108 = vmatprep.subr.mxu0 0.0
    %109 = vmatpush1.msra.mxu0 0.0
    %110 = vmatprep.mubr.f32.mxu0 0.0
    %111 = vmatmul.mubr.f32.gmra.mrb[0].mxu0 %v21
    %v112 = vpop.f32.mrb[0].mxu0
    %v113 = vadd.f32 %v44, %v112
    %v114 = vpop.f32.mrb[0].mxu0
    %115 = vmatprep.mubr.f32.mxu0 0.0
    %116 = vmatmul.mubr.f32.gmra.mrb[0].mxu0 %v22
    %v117 = vpop.f32.mrb[0].mxu0
    %v118 = vadd.f32 %v44, %v117
    %v119 = vpop.f32.mrb[0].mxu0
    %120 = vdwg.mxu0
    %v121 = vld [vmem:[%s3] sm:$0xff]
    %v122 = vld [vmem:[%s3 + $0x8] sm:$0xff]
    %v123 = vld [vmem:[%s3 + $0x10] sm:$0xff]
    %v124 = vld [vmem:[%s3 + $0x18] sm:$0xff]
    %v125 = vld [vmem:[%s4] sm:$0x1]
    %v127 = vlaneseq
    %v128 = vshrl.u32 %v127, 7
    %v129 = vsub.s32 0, %v128
    %v130 = vrot.slane %v125, %v129
    %vm132 = vcmask 261120
    %v134 = vsel %vm132, %v113, 0
    %v137 = vsel %vm132, %v118, 0
    %139 = vmatprep.subr.mxu0 0.0
    %140 = vmatpush1.msra.mxu0 %v121
    %141 = vmatprep.subr.mxu0 0.0
    %142 = vmatpush1.msra.mxu0 %v122
    %143 = vmatprep.subr.mxu0 0.0
    %144 = vmatpush1.msra.mxu0 %v123
    %145 = vmatprep.subr.mxu0 0.0
    %146 = vmatpush1.msra.mxu0 %v124
    %147 = vmatprep.subr.mxu0 0.0
    %148 = vmatpush1.msra.mxu0 0.0
    %149 = vmatprep.subr.mxu0 0.0
    %150 = vmatpush1.msra.mxu0 0.0
    %151 = vmatprep.subr.mxu0 0.0
    %152 = vmatpush1.msra.mxu0 0.0
    %153 = vmatprep.subr.mxu0 0.0
    %154 = vmatpush1.msra.mxu0 0.0
    %155 = vmatprep.subr.mxu0 0.0
    %156 = vmatpush1.msra.mxu0 0.0
    %157 = vmatprep.subr.mxu0 0.0
    %158 = vmatpush1.msra.mxu0 0.0
    %159 = vmatprep.subr.mxu0 0.0
    %160 = vmatpush1.msra.mxu0 0.0
    %161 = vmatprep.subr.mxu0 0.0
    %162 = vmatpush1.msra.mxu0 0.0
    %163 = vmatprep.subr.mxu0 0.0
    %164 = vmatpush1.msra.mxu0 0.0
    %165 = vmatprep.subr.mxu0 0.0
    %166 = vmatpush1.msra.mxu0 0.0
    %167 = vmatprep.subr.mxu0 0.0
    %168 = vmatpush1.msra.mxu0 0.0
    %169 = vmatprep.subr.mxu0 0.0
    %170 = vmatpush1.msra.mxu0 0.0
    %171 = vmatprep.subr.mxu0 0.0
    %172 = vmatpush1.msra.mxu0 0.0
    %173 = vmatprep.subr.mxu0 0.0
    %174 = vmatpush1.msra.mxu0 0.0
    %175 = vmatprep.subr.mxu0 0.0
    %176 = vmatpush1.msra.mxu0 0.0
    %177 = vmatprep.subr.mxu0 0.0
    %178 = vmatpush1.msra.mxu0 0.0
    %179 = vmatprep.subr.mxu0 0.0
    %180 = vmatpush1.msra.mxu0 0.0
    %181 = vmatprep.subr.mxu0 0.0
    %182 = vmatpush1.msra.mxu0 0.0
    %183 = vmatprep.subr.mxu0 0.0
    %184 = vmatpush1.msra.mxu0 0.0
    %185 = vmatprep.subr.mxu0 0.0
    %186 = vmatpush1.msra.mxu0 0.0
    %187 = vmatprep.subr.mxu0 0.0
    %188 = vmatpush1.msra.mxu0 0.0
    %189 = vmatprep.subr.mxu0 0.0
    %190 = vmatpush1.msra.mxu0 0.0
    %191 = vmatprep.subr.mxu0 0.0
    %192 = vmatpush1.msra.mxu0 0.0
    %193 = vmatprep.subr.mxu0 0.0
    %194 = vmatpush1.msra.mxu0 0.0
    %195 = vmatprep.subr.mxu0 0.0
    %196 = vmatpush1.msra.mxu0 0.0
    %197 = vmatprep.subr.mxu0 0.0
    %198 = vmatpush1.msra.mxu0 0.0
    %199 = vmatprep.subr.mxu0 0.0
    %200 = vmatpush1.msra.mxu0 0.0
    %201 = vmatprep.subr.mxu0 0.0
    %202 = vmatpush1.msra.mxu0 0.0
    %203 = vmatprep.mubr.f32.mxu0 0.0
    %204 = vmatmul.mubr.f32.gmra.mrb[0].mxu0 %v134
    %v205 = vpop.f32.mrb[0].mxu0
    %v206 = vadd.f32 %v130, %v205
    %v207 = vpop.f32.mrb[0].mxu0
    %208 = vmatprep.mubr.f32.mxu0 0.0
    %209 = vmatmul.mubr.f32.gmra.mrb[0].mxu0 %v137
    %v210 = vpop.f32.mrb[0].mxu0
    %v211 = vadd.f32 %v130, %v210
    %v212 = vpop.f32.mrb[0].mxu0
    %213 = vdwg.mxu0
    %v214 = vxor.u32 %v206, 2147483648
    %v215 = vxor.u32 %v211, 2147483648
    %v216 = vmul.f32 %v214, 1.442695
    %v217 = vpow.pop %v216
    %v218 = vmul.f32 %v215, 1.442695
    %v219 = vpow.pop %v218
    %v220 = vadd.f32 %v217, 1.0
    %v221 = vadd.f32 %v219, 1.0
    %v222 = vrcp.pop %v220
    %v223 = vmul.f32 1.0, %v222
    %v224 = vrcp.pop %v221
    %v225 = vmul.f32 1.0, %v224
    %226 = vst [vmem:[#allocation2] sm:$0xff] %v223
    %227 = vst [vmem:[#allocation2 + $0x8] sm:$0xff] %v225
    // Predicated region
    $region22: #{_forward_2mm.1} parent=1 // pred_check
      _
    $region23: #{_forward_2mm.1} parent=1 // pred_check_branch
      %229 = sbr.rel (0) target = $region25
    $region24: #{_forward_2mm.1} parent=1 // pred_region
      %s231 = ssub.s32 256, 32
      %232 = vsyncadd [#allocation3], %s231
      %s233 = sshll.u32 [#allocation2], 4
      %s234 = int_to_ptr.vmem [resolvable:$true] %s233
      %239 = dma.vmem_to_hbm [thread:$0]  %s234, 32, %s5, [#allocation3], 32, 32, 2
    $region25: #{_forward_2mm.1} parent=1 // pred_fallthru
      _
    // Predicated region
    $region26: #{_forward_2mm.1} parent=1 // pred_check
      _
    $region27: #{_forward_2mm.1} parent=1 // pred_check_branch
      %241 = sbr.rel (0) target = $region29
    $region28: #{_forward_2mm.1} parent=1 // pred_region
      %242 = dma.done [#allocation3], 256
    $region29: #{_forward_2mm.1} parent=1 // pred_fallthru
      _
    %243 = vsyncpa [#allocation3], 1

</llo_original>
